<compile_context>
chip_gen: v7x
topology: tpu7x:2x2x1
jax: 0.10.0
libtpu: 0.0.40
codegen_flags: <defaults>
</compile_context>

<pallas_src>
import functools
import math

import jax
import jax.numpy as jnp
from jax import lax
from jax.experimental import pallas as pl
from jax.experimental.pallas import tpu as pltpu

_LANES = 128
_SUBLANES = 8
_MAX_TILE_ROWS = 4096   # (4096,128) f32 = 2 MiB/block; 2 inputs x 2 bufs = 8 MiB VMEM


def _fscore_partials_kernel(pr_ref, gt_ref, out_ref, tp_acc, pr_acc, gt_acc, *,
                            logit_threshold, tile_rows, blocks_per_split,
                            block_elems, full_blocks, total, has_masked):
    j = pl.program_id(1)

    @pl.when(j == 0)
    def _():
        tp_acc[...] = jnp.zeros_like(tp_acc)
        pr_acc[...] = jnp.zeros_like(pr_acc)
        gt_acc[...] = jnp.zeros_like(gt_acc)

    # sigmoid(x) > t  <=>  x > logit(t): no exp/reciprocal, compare in native dtype
    # (no full-tile f32 convert of the pr operand).
    pred = (pr_ref[...] > logit_threshold).astype(jnp.float32)
    g = gt_ref[...].astype(jnp.float32)          # no-op when gt is already f32

    def accumulate(pred_t, g_t):
        pg = pred_t * g_t
        if tile_rows % _SUBLANES == 0:
            sub = tile_rows // _SUBLANES
            # Lane/sublane-aligned reshape (no layout change) + VPU vreg adds.
            tp_acc[...] += jnp.sum(pg.reshape(sub, _SUBLANES, _LANES), axis=0)
            pr_acc[...] += jnp.sum(pred_t.reshape(sub, _SUBLANES, _LANES), axis=0)
            gt_acc[...] += jnp.sum(g_t.reshape(sub, _SUBLANES, _LANES), axis=0)
        else:
            # Tiny single-block inputs whose row count is not a multiple of 8.
            tp_acc[0:1, :] = tp_acc[0:1, :] + jnp.sum(pg, axis=0, keepdims=True)
            pr_acc[0:1, :] = pr_acc[0:1, :] + jnp.sum(pred_t, axis=0, keepdims=True)
            gt_acc[0:1, :] = gt_acc[0:1, :] + jnp.sum(g_t, axis=0, keepdims=True)

    if not has_masked:
        # No ragged tail and no redundant grid point: unmasked fast path everywhere.
        accumulate(pred, g)
    else:
        p = pl.program_id(0)
        b = p * blocks_per_split + j          # global (unclamped) block index

        @pl.when(b < full_blocks)             # fully-valid blocks: no mask cost
        def _():
            accumulate(pred, g)

        @pl.when(b >= full_blocks)            # ragged tail / redundant block only
        def _():
            # Valid data of a partial block sits at its nominal offsets; the tail
            # (and fully-redundant re-reads) are masked out by flat element index.
            row_ids = lax.broadcasted_iota(jnp.int32, (tile_rows, _LANES), 0)
            lane_ids = lax.broadcasted_iota(jnp.int32, (tile_rows, _LANES), 1)
            elem = row_ids * _LANES + lane_ids
            rem = total - b * block_elems     # <= 0 for redundant blocks
            valid = elem < rem
            accumulate(jnp.where(valid, pred, 0.0), jnp.where(valid, g, 0.0))

    @pl.when(j == pl.num_programs(1) - 1)
    def _():
        # Emit per-core per-lane partials; the scalar combine happens in the wrapper.
        out_ref[0, 0, :, :] = tp_acc[...]
        out_ref[0, 1, :, :] = pr_acc[...]
        out_ref[0, 2, :, :] = gt_acc[...]


def fscore_metric(y_pr, y_gt, *, beta=1.0, eps=1e-7, threshold=0.5,
                  max_tile_rows=_MAX_TILE_ROWS):
    """Pallas equivalent of FscoreMetric()(y_pr, y_gt). Returns a scalar f32."""
    assert y_pr.shape == y_gt.shape
    assert max_tile_rows % _SUBLANES == 0
    total = int(y_pr.size)
    logit_t = float(math.log(threshold / (1.0 - threshold)))   # 0.0 for threshold=0.5

    # Keep native dtypes (any casting happens inside the kernel, after the DMA).
    pr_flat = jnp.reshape(y_pr, (-1,))
    gt_flat = jnp.reshape(y_gt, (-1,))

    # Only an element-level tail (total % 128 != 0, rare for real segmentation
    # shapes) needs a <=127-element pad so the lane-dense view exists; padded
    # values are irrelevant because the kernel masks by flat element index.
    lane_pad = (-total) % _LANES
    if lane_pad:
        pr_flat = jnp.pad(pr_flat, (0, lane_pad))
        gt_flat = jnp.pad(gt_flat, (0, lane_pad))
    rows = (total + lane_pad) // _LANES

    pr2d = pr_flat.reshape(rows, _LANES)
    gt2d = gt_flat.reshape(rows, _LANES)

    # Tile: either the full array (single block) or a multiple-of-8 row tile.
    tile_rows = max_tile_rows if rows >= max_tile_rows else rows
    blocks_total = -(-rows // tile_rows)
    block_elems = tile_rows * _LANES
    full_blocks = total // block_elems          # blocks that are entirely valid

    n_split = 2 if blocks_total >= 2 else 1     # use both TCs on v7x; harmless on 1-TC
    bpc = -(-blocks_total // n_split)           # blocks per split
    has_masked = (total % block_elems != 0) or (n_split * bpc != blocks_total)

    kernel = functools.partial(
        _fscore_partials_kernel,
        logit_threshold=logit_t, tile_rows=tile_rows, blocks_per_split=bpc,
        block_elems=block_elems, full_blocks=full_blocks, total=total,
        has_masked=has_masked)

    def in_map(p, j):
        # Clamp redundant grid points (odd block counts) onto the last block;
        # their contribution is masked to zero in the kernel.
        return (jnp.minimum(p * bpc + j, blocks_total - 1), 0)

    parts = pl.pallas_call(
        kernel,
        out_shape=jax.ShapeDtypeStruct((n_split, 3, _SUBLANES, _LANES), jnp.float32),
        grid_spec=pltpu.PrefetchScalarGridSpec(
            num_scalar_prefetch=0,
            grid=(n_split, bpc),
            in_specs=[
                pl.BlockSpec((tile_rows, _LANES), in_map),
                pl.BlockSpec((tile_rows, _LANES), in_map),
            ],
            out_specs=pl.BlockSpec((1, 3, _SUBLANES, _LANES),
                                   lambda p, j: (p, 0, 0, 0)),
            scratch_shapes=[
                pltpu.VMEM((_SUBLANES, _LANES), jnp.float32),
                pltpu.VMEM((_SUBLANES, _LANES), jnp.float32),
                pltpu.VMEM((_SUBLANES, _LANES), jnp.float32),
            ],
        ),
        compiler_params=pltpu.CompilerParams(
            dimension_semantics=("parallel", "arbitrary")),
    )(pr2d, gt2d)

    sums = jnp.sum(parts, axis=(0, 2, 3))        # (3,) = [tp, sum(pred), sum(gt)]
    tp, pr_sum, gt_sum = sums[0], sums[1], sums[2]
    fp = pr_sum - tp
    fn = gt_sum - tp
    b2 = beta * beta
    return ((1.0 + b2) * tp + eps) / ((1.0 + b2) * tp + b2 * fn + fp + eps)


def _fscore_ref(y_pr, y_gt, beta=1.0, eps=1e-7, threshold=0.5):
    pr = jax.nn.sigmoid(y_pr.astype(jnp.float32))
    pr = (pr > threshold).astype(jnp.float32)
    gt = y_gt.astype(jnp.float32)
    tp = jnp.sum(gt * pr)
    fp = jnp.sum(pr) - tp
    fn = jnp.sum(gt) - tp
    b2 = beta * beta
    return ((1.0 + b2) * tp + eps) / ((1.0 + b2) * tp + b2 * fn + fp + eps)


if __name__ == "__main__":
    key = jax.random.PRNGKey(0)
    k1, k2, k3, k4, k5, k6 = jax.random.split(key, 6)

    # 1) Typical small segmentation batch: lane-aligned, single block, fast path.
    y_pr = jax.random.normal(k1, (2, 4, 16, 16), dtype=jnp.float32)         # logits
    y_gt = (jax.random.uniform(k2, (2, 4, 16, 16)) > 0.5).astype(jnp.float32)
    s1 = fscore_metric(y_pr, y_gt)
    jax.block_until_ready(s1)
    r1 = _fscore_ref(y_pr, y_gt)
    assert jnp.allclose(s1, r1, rtol=1e-5, atol=1e-6), (s1, r1)

    # 2) Multi-block + ragged last block + dual-split path (small tile to exercise it).
    y_pr2 = jax.random.normal(k3, (2, 4, 20, 16), dtype=jnp.float32)
    y_gt2 = (jax.random.uniform(k4, (2, 4, 20, 16)) > 0.5).astype(jnp.float32)
    s2 = fscore_metric(y_pr2, y_gt2, max_tile_rows=8)
    r2 = _fscore_ref(y_pr2, y_gt2)
    assert jnp.allclose(s2, r2, rtol=1e-5, atol=1e-6), (s2, r2)

    # 3) Element-level ragged tail (total % 128 != 0) + non-default threshold/beta.
    y_pr3 = jax.random.normal(k5, (2, 3, 7, 11), dtype=jnp.float32)
    y_gt3 = (jax.random.uniform(k6, (2, 3, 7, 11)) > 0.5).astype(jnp.float32)
    s3 = fscore_metric(y_pr3, y_gt3, beta=2.0, threshold=0.3)
    r3 = _fscore_ref(y_pr3, y_gt3, beta=2.0, threshold=0.3)
    assert jnp.allclose(s3, r3, rtol=1e-5, atol=1e-6), (s3, r3)

    print("KERNEL_OK")
</pallas_src>

<mosaic_0001>
module attributes {stable_mosaic.version = 11 : i64} {
  func.func @_fscore_partials_kernel(%arg0: i32, %arg1: i32, %arg2: memref<16x128xf32, #tpu.memory_space<vmem>>, %arg3: memref<16x128xf32, #tpu.memory_space<vmem>>, %arg4: memref<1x3x8x128xf32, #tpu.memory_space<vmem>>, %arg5: memref<8x128xf32, #tpu.memory_space<vmem>>, %arg6: memref<8x128xf32, #tpu.memory_space<vmem>>, %arg7: memref<8x128xf32, #tpu.memory_space<vmem>>) attributes {dimension_semantics = [#tpu.dimension_semantics<parallel>, #tpu.dimension_semantics<arbitrary>], iteration_bounds = array<i64: 1, 1>, scalar_prefetch = 0 : i64, scratch_operands = 3 : i64, tpu.core_type = #tpu.core_type<tc>, window_params = [{transform_indices = @transform_0, window_bounds = array<i64: 16, 128>}, {transform_indices = @transform_1, window_bounds = array<i64: 16, 128>}, {transform_indices = @transform_2, window_bounds = array<i64: 1, 3, 8, 128>}]} {
    %c0_i32 = arith.constant 0 : i32
    %0 = arith.cmpi eq, %arg1, %c0_i32 : i32
    %1 = arith.extui %0 : i1 to i32
    %c0_i32_0 = arith.constant 0 : i32
    %2 = arith.cmpi ne, %1, %c0_i32_0 : i32
    scf.if %2 {
      %cst_21 = arith.constant 0.000000e+00 : f32
      %28 = vector.broadcast %cst_21 : f32 to vector<8x128xf32>
      %c0_22 = arith.constant 0 : index
      %c0_23 = arith.constant 0 : index
      %29 = vector.load %arg5[%c0_22, %c0_23] : memref<8x128xf32, #tpu.memory_space<vmem>>, vector<8x128xf32>
      tpu.vector_store %arg5[%c0_22, %c0_23], %28 {strides = array<i32>} : memref<8x128xf32, #tpu.memory_space<vmem>>, vector<8x128xf32>,
      %cst_24 = arith.constant 0.000000e+00 : f32
      %30 = vector.broadcast %cst_24 : f32 to vector<8x128xf32>
      %c0_25 = arith.constant 0 : index
      %c0_26 = arith.constant 0 : index
      %31 = vector.load %arg6[%c0_25, %c0_26] : memref<8x128xf32, #tpu.memory_space<vmem>>, vector<8x128xf32>
      tpu.vector_store %arg6[%c0_25, %c0_26], %30 {strides = array<i32>} : memref<8x128xf32, #tpu.memory_space<vmem>>, vector<8x128xf32>,
      %cst_27 = arith.constant 0.000000e+00 : f32
      %32 = vector.broadcast %cst_27 : f32 to vector<8x128xf32>
      %c0_28 = arith.constant 0 : index
      %c0_29 = arith.constant 0 : index
      %33 = vector.load %arg7[%c0_28, %c0_29] : memref<8x128xf32, #tpu.memory_space<vmem>>, vector<8x128xf32>
      tpu.vector_store %arg7[%c0_28, %c0_29], %32 {strides = array<i32>} : memref<8x128xf32, #tpu.memory_space<vmem>>, vector<8x128xf32>,
    } else {
    }
    %c0 = arith.constant 0 : index
    %c0_1 = arith.constant 0 : index
    %3 = vector.load %arg2[%c0, %c0_1] : memref<16x128xf32, #tpu.memory_space<vmem>>, vector<16x128xf32>
    %cst = arith.constant 0.000000e+00 : f32
    %4 = vector.broadcast %cst : f32 to vector<16x128xf32>
    %5 = arith.cmpf ogt, %3, %4 : vector<16x128xf32>
    %6 = arith.extui %5 : vector<16x128xi1> to vector<16x128xi32>
    %7 = arith.sitofp %6 : vector<16x128xi32> to vector<16x128xf32>
    %c0_2 = arith.constant 0 : index
    %c0_3 = arith.constant 0 : index
    %8 = vector.load %arg3[%c0_2, %c0_3] : memref<16x128xf32, #tpu.memory_space<vmem>>, vector<16x128xf32>
    %9 = arith.mulf %7, %8 : vector<16x128xf32>
    %c0_4 = arith.constant 0 : index
    %c0_5 = arith.constant 0 : index
    %10 = vector.load %arg5[%c0_4, %c0_5] : memref<8x128xf32, #tpu.memory_space<vmem>>, vector<8x128xf32>
    %11 = vector.shape_cast %9 : vector<16x128xf32> to vector<2x8x128xf32>
    %cst_6 = arith.constant dense<0.000000e+00> : vector<8x128xf32>
    %12 = vector.multi_reduction <add>, %11, %cst_6 [0] : vector<2x8x128xf32> to vector<8x128xf32>
    %13 = arith.addf %10, %12 : vector<8x128xf32>
    %c0_7 = arith.constant 0 : index
    %c0_8 = arith.constant 0 : index
    %14 = vector.load %arg5[%c0_7, %c0_8] : memref<8x128xf32, #tpu.memory_space<vmem>>, vector<8x128xf32>
    tpu.vector_store %arg5[%c0_7, %c0_8], %13 {strides = array<i32>} : memref<8x128xf32, #tpu.memory_space<vmem>>, vector<8x128xf32>,
    %c0_9 = arith.constant 0 : index
    %c0_10 = arith.constant 0 : index
    %15 = vector.load %arg6[%c0_9, %c0_10] : memref<8x128xf32, #tpu.memory_space<vmem>>, vector<8x128xf32>
    %16 = vector.shape_cast %7 : vector<16x128xf32> to vector<2x8x128xf32>
    %cst_11 = arith.constant dense<0.000000e+00> : vector<8x128xf32>
    %17 = vector.multi_reduction <add>, %16, %cst_11 [0] : vector<2x8x128xf32> to vector<8x128xf32>
    %18 = arith.addf %15, %17 : vector<8x128xf32>
    %c0_12 = arith.constant 0 : index
    %c0_13 = arith.constant 0 : index
    %19 = vector.load %arg6[%c0_12, %c0_13] : memref<8x128xf32, #tpu.memory_space<vmem>>, vector<8x128xf32>
    tpu.vector_store %arg6[%c0_12, %c0_13], %18 {strides = array<i32>} : memref<8x128xf32, #tpu.memory_space<vmem>>, vector<8x128xf32>,
    %c0_14 = arith.constant 0 : index
    %c0_15 = arith.constant 0 : index
    %20 = vector.load %arg7[%c0_14, %c0_15] : memref<8x128xf32, #tpu.memory_space<vmem>>, vector<8x128xf32>
    %21 = vector.shape_cast %8 : vector<16x128xf32> to vector<2x8x128xf32>
    %cst_16 = arith.constant dense<0.000000e+00> : vector<8x128xf32>
    %22 = vector.multi_reduction <add>, %21, %cst_16 [0] : vector<2x8x128xf32> to vector<8x128xf32>
    %23 = arith.addf %20, %22 : vector<8x128xf32>
    %c0_17 = arith.constant 0 : index
    %c0_18 = arith.constant 0 : index
    %24 = vector.load %arg7[%c0_17, %c0_18] : memref<8x128xf32, #tpu.memory_space<vmem>>, vector<8x128xf32>
    tpu.vector_store %arg7[%c0_17, %c0_18], %23 {strides = array<i32>} : memref<8x128xf32, #tpu.memory_space<vmem>>, vector<8x128xf32>,
    %c0_i32_19 = arith.constant 0 : i32
    %25 = arith.cmpi eq, %arg1, %c0_i32_19 : i32
    %26 = arith.extui %25 : i1 to i32
    %c0_i32_20 = arith.constant 0 : i32
    %27 = arith.cmpi ne, %26, %c0_i32_20 : i32
    scf.if %27 {
      %c0_21 = arith.constant 0 : index
      %c0_22 = arith.constant 0 : index
      %28 = vector.load %arg5[%c0_21, %c0_22] : memref<8x128xf32, #tpu.memory_space<vmem>>, vector<8x128xf32>
      %c0_23 = arith.constant 0 : index
      %c0_24 = arith.constant 0 : index
      %c0_25 = arith.constant 0 : index
      %c0_26 = arith.constant 0 : index
      %29 = vector.load %arg4[%c0_23, %c0_24, %c0_25, %c0_26] : memref<1x3x8x128xf32, #tpu.memory_space<vmem>>, vector<1x1x8x128xf32>
      %30 = vector.shape_cast %29 : vector<1x1x8x128xf32> to vector<8x128xf32>
      %31 = vector.shape_cast %28 : vector<8x128xf32> to vector<1x1x8x128xf32>
      tpu.vector_store %arg4[%c0_23, %c0_24, %c0_25, %c0_26], %31 {strides = array<i32>} : memref<1x3x8x128xf32, #tpu.memory_space<vmem>>, vector<1x1x8x128xf32>,
      %c0_27 = arith.constant 0 : index
      %c0_28 = arith.constant 0 : index
      %32 = vector.load %arg6[%c0_27, %c0_28] : memref<8x128xf32, #tpu.memory_space<vmem>>, vector<8x128xf32>
      %c0_29 = arith.constant 0 : index
      %c1 = arith.constant 1 : index
      %c0_30 = arith.constant 0 : index
      %c0_31 = arith.constant 0 : index
      %33 = vector.load %arg4[%c0_29, %c1, %c0_30, %c0_31] : memref<1x3x8x128xf32, #tpu.memory_space<vmem>>, vector<1x1x8x128xf32>
      %34 = vector.shape_cast %33 : vector<1x1x8x128xf32> to vector<8x128xf32>
      %35 = vector.shape_cast %32 : vector<8x128xf32> to vector<1x1x8x128xf32>
      tpu.vector_store %arg4[%c0_29, %c1, %c0_30, %c0_31], %35 {strides = array<i32>} : memref<1x3x8x128xf32, #tpu.memory_space<vmem>>, vector<1x1x8x128xf32>,
      %c0_32 = arith.constant 0 : index
      %c0_33 = arith.constant 0 : index
      %36 = vector.load %arg7[%c0_32, %c0_33] : memref<8x128xf32, #tpu.memory_space<vmem>>, vector<8x128xf32>
      %c0_34 = arith.constant 0 : index
      %c2 = arith.constant 2 : index
      %c0_35 = arith.constant 0 : index
      %c0_36 = arith.constant 0 : index
      %37 = vector.load %arg4[%c0_34, %c2, %c0_35, %c0_36] : memref<1x3x8x128xf32, #tpu.memory_space<vmem>>, vector<1x1x8x128xf32>
      %38 = vector.shape_cast %37 : vector<1x1x8x128xf32> to vector<8x128xf32>
      %39 = vector.shape_cast %36 : vector<8x128xf32> to vector<1x1x8x128xf32>
      tpu.vector_store %arg4[%c0_34, %c2, %c0_35, %c0_36], %39 {strides = array<i32>} : memref<1x3x8x128xf32, #tpu.memory_space<vmem>>, vector<1x1x8x128xf32>,
    } else {
    }
    return
  }
  func.func @transform_0(%arg0: i32, %arg1: i32) -> (i32, i32) {
    %c1_i32 = arith.constant 1 : i32
    %0 = arith.muli %arg0, %c1_i32 : i32
    %1 = arith.addi %0, %arg1 : i32
    %c0_i32 = arith.constant 0 : i32
    %2 = arith.minsi %1, %c0_i32 : i32
    %c0_i32_0 = arith.constant 0 : i32
    %c0_i32_1 = arith.constant 0 : i32
    return %2, %c0_i32_0 : i32, i32
  }
  func.func @transform_1(%arg0: i32, %arg1: i32) -> (i32, i32) {
    %c1_i32 = arith.constant 1 : i32
    %0 = arith.muli %arg0, %c1_i32 : i32
    %1 = arith.addi %0, %arg1 : i32
    %c0_i32 = arith.constant 0 : i32
    %2 = arith.minsi %1, %c0_i32 : i32
    %c0_i32_0 = arith.constant 0 : i32
    %c0_i32_1 = arith.constant 0 : i32
    return %2, %c0_i32_0 : i32, i32
  }
  func.func @transform_2(%arg0: i32, %arg1: i32) -> (i32, i32, i32, i32) {
    %c0_i32 = arith.constant 0 : i32
    %c0_i32_0 = arith.constant 0 : i32
    %c0_i32_1 = arith.constant 0 : i32
    %c0_i32_2 = arith.constant 0 : i32
    return %arg0, %c0_i32, %c0_i32_0, %c0_i32_1 : i32, i32, i32, i32
  }
}

</mosaic_0001>

<llo_original>
// kernel: tpu_custom_call.1
$region0: #{tpu_custom_call.1}
  #allocation0 [shape = 'u32[]', space=smem, size = 0x4, offset = 0x4, fixed_abs, tag = 'smem constant byte address 0x4 - core index']
  #allocation1 [shape = 'u32[144,128]{1,0:T(1,128)}', space=vmem, size = 0x12000, scoped, tag = 'internal scratch']
  #allocation2 [shape = 'f32[8,128]{1,0:T(8,128)}', space=vmem, size = 0x1000, scoped, tag = 'scratch operand']
  #allocation3 [shape = 'f32[8,128]{1,0:T(8,128)}', space=vmem, size = 0x1000, scoped, tag = 'scratch operand']
  #allocation4 [shape = 'f32[8,128]{1,0:T(8,128)}', space=vmem, size = 0x1000, scoped, tag = 'scratch operand']
  %s0 = inlined_call_operand.hbm [shape: f32[16,128], index: 0, kind: input, shape index: {}]
  %s1 = inlined_call_operand.hbm [shape: f32[16,128], index: 1, kind: input, shape index: {}]
  %s2 = inlined_call_operand.hbm [shape: f32[1,3,8,128], index: 2, kind: output, shape index: {}]
  %s3 = sld [smem:[#allocation0]]
  $region34: #{tpu_custom_call.1} parent=0
    _
  %s5 = ssub.s32 1, %s3
  %s6 = scalar_select 0, %s5, %s3
  $region1: #{tpu_custom_call.1} parent=0
    #allocation5 [shape = 'u8[8192]{0}', space=vmem, size = 0x2000, scoped, tag = 'input window, operand 0, single buffered']
    #allocation6 [shape = 's32[1]{0}', space=sflag, size = 0x4, scoped, tag = 'scoped memory for tpu_custom_call.1']
    #allocation7 [shape = 's32[1]{0}', space=sflag, size = 0x4, scoped, tag = 'scoped memory for tpu_custom_call.1']
    #allocation8 [shape = 'u8[8192]{0}', space=vmem, size = 0x2000, scoped, tag = 'input window, operand 1, single buffered']
    #allocation9 [shape = 's32[1]{0}', space=sflag, size = 0x4, scoped, tag = 'scoped memory for tpu_custom_call.1']
    #allocation10 [shape = 'u8[12288]{0}', space=vmem, size = 0x3000, scoped, tag = 'output window, operand 0, single buffered']
    %7 = vsyncpa [#allocation6], 0
    %8 = vsyncpa [#allocation9], 0
    %9 = vsyncpa [#allocation7], 0
    // Predicated region
    $region2: #{tpu_custom_call.1} parent=1 // pred_check
      _
    $region3: #{tpu_custom_call.1} parent=1 // pred_check_branch
      %11 = sbr.rel (0) target = $region5
    $region4: #{tpu_custom_call.1} parent=1 // pred_region
      %s12 = sadd.s32 0, 0
      %p13 = scmp.lt.s32.totalorder %s12, 0
      %s14 = scalar_select %p13, %s12, 0
      %s15 = smul.u32 2, %s14
      %s17 = ssub.s32 256, 256
      %18 = vsyncadd [#allocation6], %s17
      %s19 = smul.addr %s15, 128
      %s20 = scalar_lea.hbm %s0, %s19
      %s21 = sshll.u32 [#allocation5], 4
      %s22 = int_to_ptr.vmem [resolvable:$true] %s21
      %27 = dma.hbm_to_vmem [thread:$0]  %s20, 256, %s22, [#allocation6], 128, 128, 8
    $region5: #{tpu_custom_call.1} parent=1 // pred_fallthru
      _
    // Predicated region
    $region6: #{tpu_custom_call.1} parent=1 // pred_check
      _
    $region7: #{tpu_custom_call.1} parent=1 // pred_check_branch
      %29 = sbr.rel (0) target = $region9
    $region8: #{tpu_custom_call.1} parent=1 // pred_region
      %s30 = sadd.s32 0, 0
      %p31 = scmp.lt.s32.totalorder %s30, 0
      %s32 = scalar_select %p31, %s30, 0
      %s33 = smul.u32 2, %s32
      %s35 = ssub.s32 256, 256
      %36 = vsyncadd [#allocation9], %s35
      %s37 = smul.addr %s33, 128
      %s38 = scalar_lea.hbm %s1, %s37
      %s39 = sshll.u32 [#allocation8], 4
      %s40 = int_to_ptr.vmem [resolvable:$true] %s39
      %45 = dma.hbm_to_vmem [thread:$0]  %s38, 256, %s40, [#allocation9], 128, 128, 8
    $region9: #{tpu_custom_call.1} parent=1 // pred_fallthru
      _
    // Predicated region
    $region10: #{tpu_custom_call.1} parent=1 // pred_check
      _
    $region11: #{tpu_custom_call.1} parent=1 // pred_check_branch
      %47 = sbr.rel (0) target = $region13
    $region12: #{tpu_custom_call.1} parent=1 // pred_region
      %48 = dma.done [#allocation6], 256
    $region13: #{tpu_custom_call.1} parent=1 // pred_fallthru
      _
    // Predicated region
    $region14: #{tpu_custom_call.1} parent=1 // pred_check
      _
    $region15: #{tpu_custom_call.1} parent=1 // pred_check_branch
      %50 = sbr.rel (0) target = $region17
    $region16: #{tpu_custom_call.1} parent=1 // pred_region
      %51 = dma.done [#allocation9], 256
    $region17: #{tpu_custom_call.1} parent=1 // pred_fallthru
      _
    %s52 = sadd.s32 0, 0
    %p53 = scmp.lt.s32.totalorder %s52, 0
    %s54 = scalar_select %p53, %s52, 0
    %s55 = smul.u32 2, %s54
    %s56 = sadd.s32 0, 0
    %p57 = scmp.lt.s32.totalorder %s56, 0
    %s58 = scalar_select %p57, %s56, 0
    %s59 = smul.u32 2, %s58
    %p60 = scmp.eq.s32.totalorder 0, 0
    // Predicated region
    $region18: #{tpu_custom_call.1} parent=1 // pred_check
      %p61 = pneg %p60
    $region19: #{tpu_custom_call.1} parent=1 // pred_check_branch
      %63 = sbr.rel (%p61) target = $region21
    $region20: #{tpu_custom_call.1} parent=1 // pred_region
      %64 = vst [vmem:[#allocation2] sm:$0xff] 0.0
      %65 = vst [vmem:[#allocation3] sm:$0xff] 0.0
      %66 = vst [vmem:[#allocation4] sm:$0xff] 0.0
    $region21: #{tpu_custom_call.1} parent=1 // pred_fallthru
      _
    %v67 = vld [vmem:[#allocation5] sm:$0xff]
    %v68 = vld [vmem:[#allocation5 + $0x8] sm:$0xff]
    %vm69 = vcmp.gt.f32.partialorder %v67, 0.0
    %vm70 = vcmp.gt.f32.partialorder %v68, 0.0
    %v71 = vsel %vm69, 1, 0
    %v72 = vsel %vm70, 1, 0
    %v73 = vcvt.s32.f32 %v71
    %v74 = vcvt.s32.f32 %v72
    %v75 = vld [vmem:[#allocation8] sm:$0xff]
    %v76 = vld [vmem:[#allocation8 + $0x8] sm:$0xff]
    %v77 = vmul.f32 %v73, %v75
    %v78 = vmul.f32 %v74, %v76
    %v79 = vld [vmem:[#allocation2] sm:$0xff]
    %v80 = vadd.f32 %v77, %v78
    %v81 = vadd.f32 %v79, %v80
    %82 = vst [vmem:[#allocation2] sm:$0xff] %v81
    %v83 = vld [vmem:[#allocation3] sm:$0xff]
    %v84 = vadd.f32 %v73, %v74
    %v85 = vadd.f32 %v83, %v84
    %86 = vst [vmem:[#allocation3] sm:$0xff] %v85
    %v87 = vld [vmem:[#allocation4] sm:$0xff]
    %v88 = vadd.f32 %v75, %v76
    %v89 = vadd.f32 %v87, %v88
    %90 = vst [vmem:[#allocation4] sm:$0xff] %v89
    // Predicated region
    $region22: #{tpu_custom_call.1} parent=1 // pred_check
      %p91 = pneg %p60
    $region23: #{tpu_custom_call.1} parent=1 // pred_check_branch
      %93 = sbr.rel (%p91) target = $region25
    $region24: #{tpu_custom_call.1} parent=1 // pred_region
      %v94 = vld [vmem:[#allocation2] sm:$0xff]
      %95 = vst [vmem:[#allocation10] sm:$0xff] %v94
      %v96 = vld [vmem:[#allocation3] sm:$0xff]
      %s97 = scalar_lea.vmem [#allocation10], 8
      %98 = vst [vmem:[%s97] sm:$0xff] %v96
      %v99 = vld [vmem:[#allocation4] sm:$0xff]
      %s100 = scalar_lea.vmem [#allocation10], 16
      %101 = vst [vmem:[%s100] sm:$0xff] %v99
    $region25: #{tpu_custom_call.1} parent=1 // pred_fallthru
      _
    // Predicated region
    $region26: #{tpu_custom_call.1} parent=1 // pred_check
      _
    $region27: #{tpu_custom_call.1} parent=1 // pred_check_branch
      %103 = sbr.rel (0) target = $region29
    $region28: #{tpu_custom_call.1} parent=1 // pred_region
      %s105 = ssub.s32 384, 384
      %106 = vsyncadd [#allocation7], %s105
      %s107 = sshll.u32 [#allocation10], 4
      %s108 = int_to_ptr.vmem [resolvable:$true] %s107
      %113 = dma.vmem_to_hbm [thread:$0]  %s108, 384, %s2, [#allocation7], 128, 128, 8
    $region29: #{tpu_custom_call.1} parent=1 // pred_fallthru
      _
    // Predicated region
    $region30: #{tpu_custom_call.1} parent=1 // pred_check
      _
    $region31: #{tpu_custom_call.1} parent=1 // pred_check_branch
      %115 = sbr.rel (0) target = $region33
    $region32: #{tpu_custom_call.1} parent=1 // pred_region
      %116 = dma.done [#allocation7], 384
    $region33: #{tpu_custom_call.1} parent=1 // pred_fallthru
      _
    %117 = vsyncpa [#allocation6], 1
    %118 = vsyncpa [#allocation9], 1
    %119 = vsyncpa [#allocation7], 1

</llo_original>
